<compile_context>
chip_gen: v7x
topology: tpu7x:2x2x1
jax: 0.10.0
libtpu: 0.0.40
codegen_flags: <defaults>
</compile_context>

<pallas_src>
import jax
import jax.numpy as jnp
from jax import lax
from jax.experimental import pallas as pl
from jax.experimental.pallas import tpu as pltpu

# ----------------------------- model config (small) ------------------------
BATCH        = 4
NUM_TOKENS   = 16          # T  (module default is 100; scaled down)
EMBED        = 20          # embedding_size (fixed by fc1 in the module)
HIDDEN1      = 20          # self.hidden1
HIDDEN2      = 60          # self.hidden2
NUM_FILTERS  = 16          # num_filters (scaled down from 100)
FILTER_SIZES = (2, 3, 4)
NUM_CLASSES  = 2
NUM_BRANCHES = len(FILTER_SIZES)
KMAX         = max(FILTER_SIZES)
CAT_LEN      = sum(NUM_TOKENS - k + 1 for k in FILTER_SIZES)   # fc in_features
LANE         = 128
ROW_PAD      = 8           # extra zero rows on x so the rolled windows stay off real data
OUT_PAD      = LANE        # lane-padded kernel output width (sliced to NUM_CLASSES outside)


def _round_up(n, m):
    return ((n + m - 1) // m) * m


# ----------------------------- Pallas kernel --------------------------------
def cnn_kernel(xp_ref,                 # (B*T + ROW_PAD, E)   zero-padded flat input
               wconv_ref, bconv_ref,   # fc1-folded conv: (KMAX*E, 3*FP), (1, 3*FP)
               wm_ref,                 # (T, 3*FP)  per-position fc weights (0 at invalid pos)
               bfc_ref,                # (1, 1)     fc bias scalar (SMEM)
               w2t_ref, b2_ref,        # fc2: (FP, H2), (1, H2)
               w3t_ref, b3_ref,        # fc3: (H2, OUT_PAD), (1, OUT_PAD)
               out_ref):               # (B, OUT_PAD)
    ROWS = xp_ref.shape[0]
    T, F3P = wm_ref.shape
    B = out_ref.shape[0]
    BT = B * T
    FP = F3P // NUM_BRANCHES           # 128-aligned per-branch block width

    xp = xp_ref[...]

    # Sliding window: row m gets [xp[m], xp[m+1], ..., xp[m+KMAX-1]] along lanes.
    # XLU sublane rotates + 8-aligned [0:BT] slices instead of offset-1/2/3 slices.
    pieces = [xp[0:BT, :]]
    for i in range(1, KMAX):
        pieces.append(pltpu.roll(xp, shift=ROWS - i, axis=0)[0:BT, :])
    win = jnp.concatenate(pieces, axis=1)                              # (BT, KMAX*E)

    # fc1 + all three conv branches in ONE MXU matmul (fc1 folded into wconv) + ReLU.
    conv = jnp.dot(win, wconv_ref[...],
                   preferred_element_type=jnp.float32) + bconv_ref[...]
    conv = jnp.maximum(conv, 0.0)                                      # (BT, 3*FP)

    # Per-position fc weights, tiled across the batch in-register (rows whose
    # window crosses a batch boundary carry 0, so their garbage never counts).
    wmask = jnp.concatenate([wm_ref[...]] * B, axis=0)                 # (BT, 3*FP)
    masked = conv * wmask

    # 0/1 batch selection generated in-kernel: sel[b, m] = 1  iff  m // T == b.
    row = lax.broadcasted_iota(jnp.int32, (B, BT), 0)
    col = lax.broadcasted_iota(jnp.int32, (B, BT), 1)
    d = col - row * T
    sel = ((d >= 0) & (d < T)).astype(jnp.float32)                     # (B, BT)

    # Reduce rows-within-batch on the MXU, then sum the 128-aligned branch blocks.
    r = jnp.dot(sel, masked, preferred_element_type=jnp.float32)       # (B, 3*FP)
    out2 = bfc_ref[0, 0] + sum(r[:, j * FP:(j + 1) * FP] for j in range(NUM_BRANCHES))

    out2 = jnp.maximum(out2, 0.0)                      # dropout(eval)=id, ReLU
    h2 = jnp.dot(out2, w2t_ref[...], preferred_element_type=jnp.float32) + b2_ref[...]
    h2 = jnp.maximum(h2, 0.0)                          # dropout(eval)=id, ReLU
    out3 = jnp.dot(h2, w3t_ref[...], preferred_element_type=jnp.float32) + b3_ref[...]
    out_ref[...] = out3.astype(out_ref.dtype)


# ----------------------------- wrapper (layout plumbing in XLA) -------------
def _prepare(x, params):
    B, T, E = x.shape
    BT = B * T
    H1 = params["w1t"].shape[1]
    F = params["wc2"].shape[2]
    FP = _round_up(F, LANE)            # per-branch lane-aligned block width
    C = params["w3t"].shape[1]
    dt = jnp.float32

    # Correctness invariants (see review notes): the padded/rolled rows only stay
    # harmless because every position whose window crosses a batch boundary has a
    # zero fc weight and the padding covers every lookahead row.
    assert ROW_PAD >= KMAX - 1, "ROW_PAD must cover the KMAX-1 window lookahead"
    assert T % 8 == 0, "T must be a sublane multiple for the in-kernel wmask tiling"

    # 1) Flatten + zero-pad rows so the rolled window rows stay inside the array.
    x_flat = x.reshape(BT, E)
    x_pad = jnp.concatenate([x_flat, jnp.zeros((ROW_PAD, E), x.dtype)], axis=0)

    # 2) Combined conv weight per window shift, branch blocks padded to FP lanes.
    #    shift_blocks[i] : (H1, 3*FP); branch-k columns are zero for shifts i >= k.
    names = (("wc2", "bc2"), ("wc3", "bc3"), ("wc4", "bc4"))
    shift_blocks = []
    for i in range(KMAX):
        cols = []
        for k, (wn, _) in zip(FILTER_SIZES, names):
            w = params[wn]                                          # (k, H1, F)
            blk = w[i] if i < k else jnp.zeros((H1, F), dt)
            cols.append(jnp.pad(blk, ((0, 0), (0, FP - F))))
        shift_blocks.append(jnp.concatenate(cols, axis=1))          # (H1, 3*FP)

    # Fold fc1 (fc1 -> conv is purely linear, no ReLU in between):
    #   conv[m] = sum_i (x[m+i] @ w1t + b1) @ shift_blocks[i] + bc
    #           = sum_i x[m+i] @ (w1t @ shift_blocks[i]) + (b1 @ sum_i shift_blocks[i] + bc)
    wconv = jnp.concatenate([params["w1t"] @ sb for sb in shift_blocks], axis=0)  # (KMAX*E, 3*FP)
    bc = jnp.concatenate(
        [jnp.pad(params[bn], ((0, 0), (0, FP - F))) for _, bn in names], axis=1)  # (1, 3*FP)
    bconv = params["b1"] @ sum(shift_blocks) + bc                                  # (1, 3*FP)

    # 3) Per-position fc weights (T, 3*FP): position t of branch k carries
    #    wfc[segment_k][t], zero for t >= T-k+1 (window would cross a batch boundary).
    wm_cols, off = [], 0
    for k in FILTER_SIZES:
        Tk = T - k + 1
        seg = params["wfc"][0, off:off + Tk]
        off += Tk
        seg_ext = jnp.concatenate([seg, jnp.zeros((T - Tk,), dt)])                 # (T,)
        blk = jnp.pad(jnp.broadcast_to(seg_ext[:, None], (T, F)), ((0, 0), (0, FP - F)))
        wm_cols.append(blk)
    wm = jnp.concatenate(wm_cols, axis=1)                                          # (T, 3*FP)

    # 4) fc2 weight padded to FP input rows (pad rows zero so the padded out2
    #    columns contribute nothing); fc3 weight/bias lane-padded to OUT_PAD.
    w2t_p = jnp.pad(params["w2t"], ((0, FP - F), (0, 0)))                          # (FP, H2)
    w3t_p = jnp.pad(params["w3t"], ((0, 0), (0, OUT_PAD - C)))                     # (H2, OUT_PAD)
    b3_p = jnp.pad(params["b3"], ((0, 0), (0, OUT_PAD - C)))                       # (1, OUT_PAD)

    return x_pad, wconv, bconv, wm, w2t_p, w3t_p, b3_p


def cnn_forward(x, params):
    B = x.shape[0]
    x_pad, wconv, bconv, wm, w2t_p, w3t_p, b3_p = _prepare(x, params)
    args = (x_pad, wconv, bconv, wm, params["bfc"],
            w2t_p, params["b2"], w3t_p, b3_p)

    vmem = pl.BlockSpec(memory_space=pltpu.MemorySpace.VMEM)
    smem = pl.BlockSpec(memory_space=pltpu.MemorySpace.SMEM)
    in_specs = [vmem, vmem, vmem, vmem, smem, vmem, vmem, vmem, vmem]

    out = pl.pallas_call(
        cnn_kernel,
        out_shape=jax.ShapeDtypeStruct((B, OUT_PAD), jnp.float32),
        in_specs=in_specs,
        out_specs=vmem,
    )(*args)
    return out[:, :NUM_CLASSES]


# ----------------------------- reference (plain JAX) ------------------------
def cnn_reference(x, params):
    h = x @ params["w1t"] + params["b1"]                      # (B, T, H1)
    feats = []
    for k, wn, bn in ((2, "wc2", "bc2"), (3, "wc3", "bc3"), (4, "wc4", "bc4")):
        Tk = x.shape[1] - k + 1
        w = params[wn]                                        # (k, H1, F)
        acc = sum(jnp.einsum("bth,hf->btf", h[:, i:i + Tk, :], w[i]) for i in range(k))
        feats.append(jax.nn.relu(acc + params[bn]))
    cat = jnp.concatenate(feats, axis=1)                      # (B, L, F)
    out = jnp.einsum("blf,l->bf", cat, params["wfc"][0]) + params["bfc"][0, 0]
    out = jax.nn.relu(out)
    out = jax.nn.relu(out @ params["w2t"] + params["b2"])
    return out @ params["w3t"] + params["b3"]


# ----------------------------- param init -----------------------------------
def init_params(key):
    def nrm(k, shape, scale=0.1):
        return (scale * jax.random.normal(k, shape)).astype(jnp.float32)

    ks = jax.random.split(key, 16)
    p = {}
    p["w1t"] = nrm(ks[0], (EMBED, HIDDEN1))            # fc1 weight, pre-transposed
    p["b1"]  = nrm(ks[1], (1, HIDDEN1))
    p["wc2"] = nrm(ks[2], (2, HIDDEN1, NUM_FILTERS))   # conv k=2 weight (k, H1, F)
    p["bc2"] = nrm(ks[3], (1, NUM_FILTERS))
    p["wc3"] = nrm(ks[4], (3, HIDDEN1, NUM_FILTERS))
    p["bc3"] = nrm(ks[5], (1, NUM_FILTERS))
    p["wc4"] = nrm(ks[6], (4, HIDDEN1, NUM_FILTERS))
    p["bc4"] = nrm(ks[7], (1, NUM_FILTERS))
    p["wfc"] = nrm(ks[8], (1, CAT_LEN))                # fc: (out=1, in=L)
    p["bfc"] = nrm(ks[9], (1, 1))
    p["w2t"] = nrm(ks[10], (NUM_FILTERS, HIDDEN2))     # fc2 weight, pre-transposed
    p["b2"]  = nrm(ks[11], (1, HIDDEN2))
    p["w3t"] = nrm(ks[12], (HIDDEN2, NUM_CLASSES))     # fc3 weight, pre-transposed
    p["b3"]  = nrm(ks[13], (1, NUM_CLASSES))
    return p


if __name__ == "__main__":
    key = jax.random.PRNGKey(0)
    kx, kp = jax.random.split(key)
    x = jax.random.normal(kx, (BATCH, NUM_TOKENS, EMBED), dtype=jnp.float32)
    params = init_params(kp)

    out = jax.block_until_ready(cnn_forward(x, params))

    ref = cnn_reference(x, params)
    assert out.shape == (BATCH, NUM_CLASSES)
    assert jnp.allclose(out, ref, atol=1e-4, rtol=1e-4), "mismatch vs reference"

    print("KERNEL_OK")
</pallas_src>

<mosaic_0001>
module attributes {stable_mosaic.version = 11 : i64} {
  func.func @cnn_kernel(%arg0: memref<72x20xf32, #tpu.memory_space<vmem>>, %arg1: memref<80x384xf32, #tpu.memory_space<vmem>>, %arg2: memref<1x384xf32, #tpu.memory_space<vmem>>, %arg3: memref<16x384xf32, #tpu.memory_space<vmem>>, %arg4: memref<1x1xf32, #tpu.memory_space<smem>>, %arg5: memref<128x60xf32, #tpu.memory_space<vmem>>, %arg6: memref<1x60xf32, #tpu.memory_space<vmem>>, %arg7: memref<60x128xf32, #tpu.memory_space<vmem>>, %arg8: memref<1x128xf32, #tpu.memory_space<vmem>>, %arg9: memref<4x128xf32, #tpu.memory_space<vmem>>) attributes {dimension_semantics = [], scalar_prefetch = 0 : i64, scratch_operands = 0 : i64, tpu.core_type = #tpu.core_type<tc>} {
    %c0 = arith.constant 0 : index
    %c0_0 = arith.constant 0 : index
    %0 = vector.load %arg0[%c0, %c0_0] : memref<72x20xf32, #tpu.memory_space<vmem>>, vector<72x20xf32>
    %1 = vector.extract_strided_slice %0 {offsets = [0, 0], sizes = [64, 20], strides = [1, 1]} : vector<72x20xf32> to vector<64x20xf32>
    %c71_i32 = arith.constant 71 : i32
    %2 = tpu.dynamic_rotate %0 by %c71_i32 dim 0 : vector<72x20xf32>, i32 -> vector<72x20xf32>
    %3 = vector.extract_strided_slice %2 {offsets = [0, 0], sizes = [64, 20], strides = [1, 1]} : vector<72x20xf32> to vector<64x20xf32>
    %c70_i32 = arith.constant 70 : i32
    %4 = tpu.dynamic_rotate %0 by %c70_i32 dim 0 : vector<72x20xf32>, i32 -> vector<72x20xf32>
    %5 = vector.extract_strided_slice %4 {offsets = [0, 0], sizes = [64, 20], strides = [1, 1]} : vector<72x20xf32> to vector<64x20xf32>
    %c69_i32 = arith.constant 69 : i32
    %6 = tpu.dynamic_rotate %0 by %c69_i32 dim 0 : vector<72x20xf32>, i32 -> vector<72x20xf32>
    %7 = vector.extract_strided_slice %6 {offsets = [0, 0], sizes = [64, 20], strides = [1, 1]} : vector<72x20xf32> to vector<64x20xf32>
    %8 = tpu.concatenate %1, %3, %5, %7 in 1 : vector<64x20xf32>, vector<64x20xf32>, vector<64x20xf32>, vector<64x20xf32> -> vector<64x80xf32>
    %c0_1 = arith.constant 0 : index
    %c0_2 = arith.constant 0 : index
    %9 = vector.load %arg1[%c0_1, %c0_2] : memref<80x384xf32, #tpu.memory_space<vmem>>, vector<80x384xf32>
    %cst = arith.constant dense<0.000000e+00> : vector<64x384xf32>
    %10 = tpu.matmul %8, %9, %cst {dimension_numbers = #tpu.dot_dimension_numbers<[1], [0], [0], [1], [0, 0, 1, 1], [], []>} : vector<64x80xf32>, vector<80x384xf32>, vector<64x384xf32> -> vector<64x384xf32>
    %c0_3 = arith.constant 0 : index
    %c0_4 = arith.constant 0 : index
    %11 = vector.load %arg2[%c0_3, %c0_4] : memref<1x384xf32, #tpu.memory_space<vmem>>, vector<1x384xf32>
    %12 = vector.broadcast %11 : vector<1x384xf32> to vector<64x384xf32>
    %13 = arith.addf %10, %12 : vector<64x384xf32>
    %cst_5 = arith.constant 0.000000e+00 : f32
    %14 = vector.broadcast %cst_5 : f32 to vector<64x384xf32>
    %15 = arith.maximumf %13, %14 : vector<64x384xf32>
    %c0_6 = arith.constant 0 : index
    %c0_7 = arith.constant 0 : index
    %16 = vector.load %arg3[%c0_6, %c0_7] : memref<16x384xf32, #tpu.memory_space<vmem>>, vector<16x384xf32>
    %17 = tpu.concatenate %16, %16, %16, %16 in 0 : vector<16x384xf32>, vector<16x384xf32>, vector<16x384xf32>, vector<16x384xf32> -> vector<64x384xf32>
    %18 = arith.mulf %15, %17 : vector<64x384xf32>
    %19 = tpu.iota {dimensions = array<i32: 0>} : vector<4x64xi32>
    %20 = tpu.iota {dimensions = array<i32: 1>} : vector<4x64xi32>
    %c16_i32 = arith.constant 16 : i32
    %21 = vector.broadcast %c16_i32 : i32 to vector<4x64xi32>
    %22 = arith.muli %19, %21 : vector<4x64xi32>
    %23 = arith.subi %20, %22 : vector<4x64xi32>
    %c0_i32 = arith.constant 0 : i32
    %24 = vector.broadcast %c0_i32 : i32 to vector<4x64xi32>
    %25 = arith.cmpi sge, %23, %24 : vector<4x64xi32>
    %c16_i32_8 = arith.constant 16 : i32
    %26 = vector.broadcast %c16_i32_8 : i32 to vector<4x64xi32>
    %27 = arith.cmpi slt, %23, %26 : vector<4x64xi32>
    %28 = arith.andi %25, %27 : vector<4x64xi1>
    %29 = arith.extui %28 : vector<4x64xi1> to vector<4x64xi32>
    %30 = arith.sitofp %29 : vector<4x64xi32> to vector<4x64xf32>
    %cst_9 = arith.constant dense<0.000000e+00> : vector<4x384xf32>
    %31 = tpu.matmul %30, %18, %cst_9 {dimension_numbers = #tpu.dot_dimension_numbers<[1], [0], [0], [1], [0, 0, 1, 1], [], []>} : vector<4x64xf32>, vector<64x384xf32>, vector<4x384xf32> -> vector<4x384xf32>
    %c0_10 = arith.constant 0 : index
    %c0_11 = arith.constant 0 : index
    %32 = memref.load %arg4[%c0_10, %c0_11] : memref<1x1xf32, #tpu.memory_space<smem>>
    %33 = vector.extract_strided_slice %31 {offsets = [0, 0], sizes = [4, 128], strides = [1, 1]} : vector<4x384xf32> to vector<4x128xf32>
    %cst_12 = arith.constant 0.000000e+00 : f32
    %34 = vector.broadcast %cst_12 : f32 to vector<4x128xf32>
    %35 = arith.addf %34, %33 : vector<4x128xf32>
    %36 = vector.extract_strided_slice %31 {offsets = [0, 128], sizes = [4, 128], strides = [1, 1]} : vector<4x384xf32> to vector<4x128xf32>
    %37 = arith.addf %35, %36 : vector<4x128xf32>
    %38 = vector.extract_strided_slice %31 {offsets = [0, 256], sizes = [4, 128], strides = [1, 1]} : vector<4x384xf32> to vector<4x128xf32>
    %39 = arith.addf %37, %38 : vector<4x128xf32>
    %40 = vector.broadcast %32 : f32 to vector<4x128xf32>
    %41 = arith.addf %40, %39 : vector<4x128xf32>
    %cst_13 = arith.constant 0.000000e+00 : f32
    %42 = vector.broadcast %cst_13 : f32 to vector<4x128xf32>
    %43 = arith.maximumf %41, %42 : vector<4x128xf32>
    %c0_14 = arith.constant 0 : index
    %c0_15 = arith.constant 0 : index
    %44 = vector.load %arg5[%c0_14, %c0_15] : memref<128x60xf32, #tpu.memory_space<vmem>>, vector<128x60xf32>
    %cst_16 = arith.constant dense<0.000000e+00> : vector<4x60xf32>
    %45 = tpu.matmul %43, %44, %cst_16 {dimension_numbers = #tpu.dot_dimension_numbers<[1], [0], [0], [1], [0, 0, 1, 1], [], []>} : vector<4x128xf32>, vector<128x60xf32>, vector<4x60xf32> -> vector<4x60xf32>
    %c0_17 = arith.constant 0 : index
    %c0_18 = arith.constant 0 : index
    %46 = vector.load %arg6[%c0_17, %c0_18] : memref<1x60xf32, #tpu.memory_space<vmem>>, vector<1x60xf32>
    %47 = vector.broadcast %46 : vector<1x60xf32> to vector<4x60xf32>
    %48 = arith.addf %45, %47 : vector<4x60xf32>
    %cst_19 = arith.constant 0.000000e+00 : f32
    %49 = vector.broadcast %cst_19 : f32 to vector<4x60xf32>
    %50 = arith.maximumf %48, %49 : vector<4x60xf32>
    %c0_20 = arith.constant 0 : index
    %c0_21 = arith.constant 0 : index
    %51 = vector.load %arg7[%c0_20, %c0_21] : memref<60x128xf32, #tpu.memory_space<vmem>>, vector<60x128xf32>
    %cst_22 = arith.constant dense<0.000000e+00> : vector<4x128xf32>
    %52 = tpu.matmul %50, %51, %cst_22 {dimension_numbers = #tpu.dot_dimension_numbers<[1], [0], [0], [1], [0, 0, 1, 1], [], []>} : vector<4x60xf32>, vector<60x128xf32>, vector<4x128xf32> -> vector<4x128xf32>
    %c0_23 = arith.constant 0 : index
    %c0_24 = arith.constant 0 : index
    %53 = vector.load %arg8[%c0_23, %c0_24] : memref<1x128xf32, #tpu.memory_space<vmem>>, vector<1x128xf32>
    %54 = vector.broadcast %53 : vector<1x128xf32> to vector<4x128xf32>
    %55 = arith.addf %52, %54 : vector<4x128xf32>
    %c0_25 = arith.constant 0 : index
    %c0_26 = arith.constant 0 : index
    %56 = vector.load %arg9[%c0_25, %c0_26] : memref<4x128xf32, #tpu.memory_space<vmem>>, vector<4x128xf32>
    tpu.vector_store %arg9[%c0_25, %c0_26], %55 {strides = array<i32>} : memref<4x128xf32, #tpu.memory_space<vmem>>, vector<4x128xf32>,
    return
  }
}

</mosaic_0001>

<llo_original>
// kernel: tpu_custom_call.1
$region0: #{tpu_custom_call.1}
  #allocation0 [shape = 'u32[]', space=smem, size = 0x4, offset = 0x4, fixed_abs, tag = 'smem constant byte address 0x4 - core index']
  #allocation1 [shape = 'u32[144,128]{1,0:T(1,128)}', space=vmem, size = 0x12000, scoped, tag = 'internal scratch']
  #allocation2 [shape = 'f32[1,1]{1,0:T(1,128)S(6)}', space=smem, size = 0x200, scoped, tag = 'scoped memory for tpu_custom_call.1']
  %s0 = inlined_call_operand.vmem [shape: f32[72,20], index: 0, kind: input, shape index: {}]
  %s1 = inlined_call_operand.vmem [shape: f32[80,384], index: 1, kind: input, shape index: {}]
  %s2 = inlined_call_operand.hbm [shape: f32[1,384], index: 2, kind: input, shape index: {}]
  %s3 = inlined_call_operand.hbm [shape: f32[16,384], index: 3, kind: input, shape index: {}]
  %s4 = inlined_call_operand.<no memory space> [shape: f32[1,1], index: 4, kind: input, shape index: {}]
  %s5 = inlined_call_operand.vmem [shape: f32[128,60], index: 5, kind: input, shape index: {}]
  %s6 = inlined_call_operand.vmem [shape: f32[1,60], index: 6, kind: input, shape index: {}]
  %s7 = inlined_call_operand.hbm [shape: f32[60,128], index: 7, kind: input, shape index: {}]
  %s8 = inlined_call_operand.vmem [shape: f32[1,128], index: 8, kind: input, shape index: {}]
  %s9 = inlined_call_operand.hbm [shape: f32[4,128], index: 9, kind: output, shape index: {}]
  %s10 = sld [smem:[#allocation0]]
  $region58: #{tpu_custom_call.1} parent=0
    _
  %s12 = ssub.s32 1, %s10
  %s13 = scalar_select 0, %s12, %s10
  %14 = sst [smem:[#allocation2]] %s4
  $region1: #{tpu_custom_call.1} parent=0
    #allocation3 [shape = 'u8[1536]{0}', space=vmem, size = 0x800, scoped, tag = 'input window, operand 2, single buffered']
    #allocation4 [shape = 's32[1]{0}', space=sflag, size = 0x4, scoped, tag = 'scoped memory for tpu_custom_call.1']
    #allocation5 [shape = 's32[1]{0}', space=sflag, size = 0x4, scoped, tag = 'scoped memory for tpu_custom_call.1']
    #allocation6 [shape = 'u8[24576]{0}', space=vmem, size = 0x6000, scoped, tag = 'input window, operand 3, single buffered']
    #allocation7 [shape = 's32[1]{0}', space=sflag, size = 0x4, scoped, tag = 'scoped memory for tpu_custom_call.1']
    #allocation8 [shape = 'u8[32768]{0}', space=vmem, size = 0x8000, scoped, tag = 'input window, operand 7, single buffered']
    #allocation9 [shape = 'u8[2048]{0}', space=vmem, size = 0x800, scoped, tag = 'output window, operand 0, single buffered']
    %15 = vsyncpa [#allocation4], 0
    %16 = vsyncpa [#allocation7], 0
    %17 = vsyncpa [#allocation5], 0
    // Predicated region
    $region2: #{tpu_custom_call.1} parent=1 // pred_check
      _
    $region3: #{tpu_custom_call.1} parent=1 // pred_check_branch
      %19 = sbr.rel (0) target = $region5
    $region4: #{tpu_custom_call.1} parent=1 // pred_region
      _
    $region5: #{tpu_custom_call.1} parent=1 // pred_fallthru
      _
    // Predicated region
    $region6: #{tpu_custom_call.1} parent=1 // pred_check
      _
    $region7: #{tpu_custom_call.1} parent=1 // pred_check_branch
      %21 = sbr.rel (0) target = $region9
    $region8: #{tpu_custom_call.1} parent=1 // pred_region
      _
    $region9: #{tpu_custom_call.1} parent=1 // pred_fallthru
      _
    // Predicated region
    $region10: #{tpu_custom_call.1} parent=1 // pred_check
      _
    $region11: #{tpu_custom_call.1} parent=1 // pred_check_branch
      %23 = sbr.rel (0) target = $region13
    $region12: #{tpu_custom_call.1} parent=1 // pred_region
      %s25 = ssub.s32 48, 48
      %26 = vsyncadd [#allocation4], %s25
      %s28 = sshll.u32 [#allocation3], 4
      %s29 = int_to_ptr.vmem [resolvable:$true] %s28
      %31 = dma.hbm_to_vmem [thread:$0]  %s2, 48, %s29, [#allocation4]
    $region13: #{tpu_custom_call.1} parent=1 // pred_fallthru
      _
    // Predicated region
    $region14: #{tpu_custom_call.1} parent=1 // pred_check
      _
    $region15: #{tpu_custom_call.1} parent=1 // pred_check_branch
      %33 = sbr.rel (0) target = $region17
    $region16: #{tpu_custom_call.1} parent=1 // pred_region
      %s35 = ssub.s32 768, 768
      %36 = vsyncadd [#allocation7], %s35
      %s37 = sshll.u32 [#allocation6], 4
      %s38 = int_to_ptr.vmem [resolvable:$true] %s37
      %43 = dma.hbm_to_vmem [thread:$0]  %s3, 768, %s38, [#allocation7], 384, 384, 24
    $region17: #{tpu_custom_call.1} parent=1 // pred_fallthru
      _
    // Predicated region
    $region18: #{tpu_custom_call.1} parent=1 // pred_check
      _
    $region19: #{tpu_custom_call.1} parent=1 // pred_check_branch
      %45 = sbr.rel (0) target = $region21
    $region20: #{tpu_custom_call.1} parent=1 // pred_region
      _
    $region21: #{tpu_custom_call.1} parent=1 // pred_fallthru
      _
    // Predicated region
    $region22: #{tpu_custom_call.1} parent=1 // pred_check
      _
    $region23: #{tpu_custom_call.1} parent=1 // pred_check_branch
      %47 = sbr.rel (0) target = $region25
    $region24: #{tpu_custom_call.1} parent=1 // pred_region
      _
    $region25: #{tpu_custom_call.1} parent=1 // pred_fallthru
      _
    // Predicated region
    $region26: #{tpu_custom_call.1} parent=1 // pred_check
      _
    $region27: #{tpu_custom_call.1} parent=1 // pred_check_branch
      %49 = sbr.rel (0) target = $region29
    $region28: #{tpu_custom_call.1} parent=1 // pred_region
      _
    $region29: #{tpu_custom_call.1} parent=1 // pred_fallthru
      _
    // Predicated region
    $region30: #{tpu_custom_call.1} parent=1 // pred_check
      _
    $region31: #{tpu_custom_call.1} parent=1 // pred_check_branch
      %51 = sbr.rel (0) target = $region33
    $region32: #{tpu_custom_call.1} parent=1 // pred_region
      %s53 = ssub.s32 1024, 1024
      %54 = vsyncadd [#allocation7], %s53
      %s55 = sshll.u32 [#allocation8], 4
      %s56 = int_to_ptr.vmem [resolvable:$true] %s55
      %61 = dma.hbm_to_vmem [thread:$0]  %s7, 1024, %s56, [#allocation7], 128, 128, 8
    $region33: #{tpu_custom_call.1} parent=1 // pred_fallthru
      _
    // Predicated region
    $region34: #{tpu_custom_call.1} parent=1 // pred_check
      _
    $region35: #{tpu_custom_call.1} parent=1 // pred_check_branch
      %63 = sbr.rel (0) target = $region37
    $region36: #{tpu_custom_call.1} parent=1 // pred_region
      _
    $region37: #{tpu_custom_call.1} parent=1 // pred_fallthru
      _
    // Predicated region
    $region38: #{tpu_custom_call.1} parent=1 // pred_check
      _
    $region39: #{tpu_custom_call.1} parent=1 // pred_check_branch
      %65 = sbr.rel (0) target = $region41
    $region40: #{tpu_custom_call.1} parent=1 // pred_region
      %66 = dma.done [#allocation4], 48
    $region41: #{tpu_custom_call.1} parent=1 // pred_fallthru
      _
    // Predicated region
    $region42: #{tpu_custom_call.1} parent=1 // pred_check
      _
    $region43: #{tpu_custom_call.1} parent=1 // pred_check_branch
      %68 = sbr.rel (0) target = $region45
    $region44: #{tpu_custom_call.1} parent=1 // pred_region
      %69 = dma.done [#allocation7], 768
    $region45: #{tpu_custom_call.1} parent=1 // pred_fallthru
      _
    // Predicated region
    $region46: #{tpu_custom_call.1} parent=1 // pred_check
      _
    $region47: #{tpu_custom_call.1} parent=1 // pred_check_branch
      %71 = sbr.rel (0) target = $region49
    $region48: #{tpu_custom_call.1} parent=1 // pred_region
      %72 = dma.done [#allocation7], 1024
    $region49: #{tpu_custom_call.1} parent=1 // pred_fallthru
      _
    %v73 = vld [vmem:[%s0] sm:$0xff]
    %v74 = vld [vmem:[%s0 + $0x8] sm:$0xff]
    %v75 = vld [vmem:[%s0 + $0x10] sm:$0xff]
    %v76 = vld [vmem:[%s0 + $0x18] sm:$0xff]
    %v77 = vld [vmem:[%s0 + $0x20] sm:$0xff]
    %v78 = vld [vmem:[%s0 + $0x28] sm:$0xff]
    %v79 = vld [vmem:[%s0 + $0x30] sm:$0xff]
    %v80 = vld [vmem:[%s0 + $0x38] sm:$0xff]
    %v81 = vld [vmem:[%s0 + $0x40] sm:$0xff]
    %v82 = vrot.slane %v73, 1
    %v83 = vrot.slane %v74, 1
    %v84 = vrot.slane %v75, 1
    %v85 = vrot.slane %v76, 1
    %v86 = vrot.slane %v77, 1
    %v87 = vrot.slane %v78, 1
    %v88 = vrot.slane %v79, 1
    %v89 = vrot.slane %v80, 1
    %v90 = vrot.slane %v81, 1
    %v91 = vlaneseq
    %v92 = vshrl.u32 %v91, 7
    %vm93 = vcmp.lt.s32.totalorder %v92, 7
    %v94 = vsel %vm93, %v89, %v90
    %v95 = vsel %vm93, %v88, %v89
    %v96 = vsel %vm93, %v87, %v88
    %v97 = vsel %vm93, %v86, %v87
    %v98 = vsel %vm93, %v85, %v86
    %v99 = vsel %vm93, %v84, %v85
    %v100 = vsel %vm93, %v83, %v84
    %v101 = vsel %vm93, %v82, %v83
    %v102 = vrot.slane %v73, 2
    %v103 = vrot.slane %v74, 2
    %v104 = vrot.slane %v75, 2
    %v105 = vrot.slane %v76, 2
    %v106 = vrot.slane %v77, 2
    %v107 = vrot.slane %v78, 2
    %v108 = vrot.slane %v79, 2
    %v109 = vrot.slane %v80, 2
    %v110 = vrot.slane %v81, 2
    %vm111 = vcmp.lt.s32.totalorder %v92, 6
    %v112 = vsel %vm111, %v109, %v110
    %v113 = vsel %vm111, %v108, %v109
    %v114 = vsel %vm111, %v107, %v108
    %v115 = vsel %vm111, %v106, %v107
    %v116 = vsel %vm111, %v105, %v106
    %v117 = vsel %vm111, %v104, %v105
    %v118 = vsel %vm111, %v103, %v104
    %v119 = vsel %vm111, %v102, %v103
    %v120 = vrot.slane %v73, 3
    %v121 = vrot.slane %v74, 3
    %v122 = vrot.slane %v75, 3
    %v123 = vrot.slane %v76, 3
    %v124 = vrot.slane %v77, 3
    %v125 = vrot.slane %v78, 3
    %v126 = vrot.slane %v79, 3
    %v127 = vrot.slane %v80, 3
    %v128 = vrot.slane %v81, 3
    %vm129 = vcmp.lt.s32.totalorder %v92, 5
    %v130 = vsel %vm129, %v127, %v128
    %v131 = vsel %vm129, %v126, %v127
    %v132 = vsel %vm129, %v125, %v126
    %v133 = vsel %vm129, %v124, %v125
    %v134 = vsel %vm129, %v123, %v124
    %v135 = vsel %vm129, %v122, %v123
    %v136 = vsel %vm129, %v121, %v122
    %v137 = vsel %vm129, %v120, %v121
    %146 = vrot.lane.b32.xlu0 %v101, 20
    %v147 = vpop.permute.xlu0 %146
    %148 = vrot.lane.b32.xlu0 %v100, 20
    %v149 = vpop.permute.xlu0 %148
    %150 = vrot.lane.b32.xlu0 %v99, 20
    %v151 = vpop.permute.xlu0 %150
    %152 = vrot.lane.b32.xlu0 %v98, 20
    %v153 = vpop.permute.xlu0 %152
    %154 = vrot.lane.b32.xlu0 %v97, 20
    %v155 = vpop.permute.xlu0 %154
    %156 = vrot.lane.b32.xlu0 %v96, 20
    %v157 = vpop.permute.xlu0 %156
    %158 = vrot.lane.b32.xlu0 %v95, 20
    %v159 = vpop.permute.xlu0 %158
    %160 = vrot.lane.b32.xlu0 %v94, 20
    %v161 = vpop.permute.xlu0 %160
    %178 = vrot.lane.b32.xlu0 %v119, 40
    %v179 = vpop.permute.xlu0 %178
    %180 = vrot.lane.b32.xlu0 %v118, 40
    %v181 = vpop.permute.xlu0 %180
    %182 = vrot.lane.b32.xlu0 %v117, 40
    %v183 = vpop.permute.xlu0 %182
    %184 = vrot.lane.b32.xlu0 %v116, 40
    %v185 = vpop.permute.xlu0 %184
    %186 = vrot.lane.b32.xlu0 %v115, 40
    %v187 = vpop.permute.xlu0 %186
    %188 = vrot.lane.b32.xlu0 %v114, 40
    %v189 = vpop.permute.xlu0 %188
    %190 = vrot.lane.b32.xlu0 %v113, 40
    %v191 = vpop.permute.xlu0 %190
    %192 = vrot.lane.b32.xlu0 %v112, 40
    %v193 = vpop.permute.xlu0 %192
    %210 = vrot.lane.b32.xlu0 %v137, 60
    %v211 = vpop.permute.xlu0 %210
    %212 = vrot.lane.b32.xlu0 %v136, 60
    %v213 = vpop.permute.xlu0 %212
    %214 = vrot.lane.b32.xlu0 %v135, 60
    %v215 = vpop.permute.xlu0 %214
    %216 = vrot.lane.b32.xlu0 %v134, 60
    %v217 = vpop.permute.xlu0 %216
    %218 = vrot.lane.b32.xlu0 %v133, 60
    %v219 = vpop.permute.xlu0 %218
    %220 = vrot.lane.b32.xlu0 %v132, 60
    %v221 = vpop.permute.xlu0 %220
    %222 = vrot.lane.b32.xlu0 %v131, 60
    %v223 = vpop.permute.xlu0 %222
    %224 = vrot.lane.b32.xlu0 %v130, 60
    %v225 = vpop.permute.xlu0 %224
    %vm234 = vcmask 162816
    %v235 = vsel %vm234, %v73, %v147
    %v236 = vsel %vm234, %v74, %v149
    %v237 = vsel %vm234, %v75, %v151
    %v238 = vsel %vm234, %v76, %v153
    %v239 = vsel %vm234, %v77, %v155
    %v240 = vsel %vm234, %v78, %v157
    %v241 = vsel %vm234, %v79, %v159
    %v242 = vsel %vm234, %v80, %v161
    %vm243 = vcmask 326656
    %v244 = vsel %vm243, %v235, %v179
    %v245 = vsel %vm243, %v236, %v181
    %v246 = vsel %vm243, %v237, %v183
    %v247 = vsel %vm243, %v238, %v185
    %v248 = vsel %vm243, %v239, %v187
    %v249 = vsel %vm243, %v240, %v189
    %v250 = vsel %vm243, %v241, %v191
    %v251 = vsel %vm243, %v242, %v193
    %vm252 = vcmask 490496
    %v253 = vsel %vm252, %v244, %v211
    %v254 = vsel %vm252, %v245, %v213
    %v255 = vsel %vm252, %v246, %v215
    %v256 = vsel %vm252, %v247, %v217
    %v257 = vsel %vm252, %v248, %v219
    %v258 = vsel %vm252, %v249, %v221
    %v259 = vsel %vm252, %v250, %v223
    %v260 = vsel %vm252, %v251, %v225
    %v261 = vld [vmem:[%s1] sm:$0xff]
    %v262 = vld [vmem:[%s1 + $0x8] sm:$0xff]
    %v263 = vld [vmem:[%s1 + $0x10] sm:$0xff]
    %v264 = vld [vmem:[%s1 + $0x18] sm:$0xff]
    %v265 = vld [vmem:[%s1 + $0x20] sm:$0xff]
    %v266 = vld [vmem:[%s1 + $0x28] sm:$0xff]
    %v267 = vld [vmem:[%s1 + $0x30] sm:$0xff]
    %v268 = vld [vmem:[%s1 + $0x38] sm:$0xff]
    %v269 = vld [vmem:[%s1 + $0x40] sm:$0xff]
    %v270 = vld [vmem:[%s1 + $0x48] sm:$0xff]
    %v271 = vld [vmem:[%s1 + $0x50] sm:$0xff]
    %v272 = vld [vmem:[%s1 + $0x58] sm:$0xff]
    %v273 = vld [vmem:[%s1 + $0x60] sm:$0xff]
    %v274 = vld [vmem:[%s1 + $0x68] sm:$0xff]
    %v275 = vld [vmem:[%s1 + $0x70] sm:$0xff]
    %v276 = vld [vmem:[%s1 + $0x78] sm:$0xff]
    %v277 = vld [vmem:[%s1 + $0x80] sm:$0xff]
    %v278 = vld [vmem:[%s1 + $0x88] sm:$0xff]
    %v279 = vld [vmem:[%s1 + $0x90] sm:$0xff]
    %v280 = vld [vmem:[%s1 + $0x98] sm:$0xff]
    %v281 = vld [vmem:[%s1 + $0xa0] sm:$0xff]
    %v282 = vld [vmem:[%s1 + $0xa8] sm:$0xff]
    %v283 = vld [vmem:[%s1 + $0xb0] sm:$0xff]
    %v284 = vld [vmem:[%s1 + $0xb8] sm:$0xff]
    %v285 = vld [vmem:[%s1 + $0xc0] sm:$0xff]
    %v286 = vld [vmem:[%s1 + $0xc8] sm:$0xff]
    %v287 = vld [vmem:[%s1 + $0xd0] sm:$0xff]
    %v288 = vld [vmem:[%s1 + $0xd8] sm:$0xff]
    %v289 = vld [vmem:[%s1 + $0xe0] sm:$0xff]
    %v290 = vld [vmem:[%s1 + $0xe8] sm:$0xff]
    %v291 = vld [vmem:[#allocation3] sm:$0x7]
    %v293 = vlaneseq
    %v294 = vshrl.u32 %v293, 7
    %v295 = vsub.s32 0, %v294
    %v296 = vrot.slane %v291, %v295
    %v297 = vlaneseq
    %v298 = vshrl.u32 %v297, 7
    %v299 = vsub.s32 1, %v298
    %v300 = vrot.slane %v291, %v299
    %v301 = vlaneseq
    %v302 = vshrl.u32 %v301, 7
    %v303 = vsub.s32 2, %v302
    %v304 = vrot.slane %v291, %v303
    %vm308 = vcmask 654336
    %v310 = vsel %vm308, %v253, 0
    %v313 = vsel %vm308, %v254, 0
    %v316 = vsel %vm308, %v255, 0
    %v319 = vsel %vm308, %v256, 0
    %v322 = vsel %vm308, %v257, 0
    %v325 = vsel %vm308, %v258, 0
    %v328 = vsel %vm308, %v259, 0
    %v331 = vsel %vm308, %v260, 0
    %333 = vmatprep.subr.mxu0 %v262
    %334 = vmatpush1.msra.mxu0 %v261
    %335 = vmatprep.subr.mxu0 %v265
    %336 = vmatpush1.msra.mxu0 %v264
    %337 = vmatprep.subr.mxu0 %v268
    %338 = vmatpush1.msra.mxu0 %v267
    %339 = vmatprep.subr.mxu0 %v271
    %340 = vmatpush1.msra.mxu0 %v270
    %341 = vmatprep.subr.mxu0 %v274
    %342 = vmatpush1.msra.mxu0 %v273
    %343 = vmatprep.subr.mxu0 %v277
    %344 = vmatpush1.msra.mxu0 %v276
    %345 = vmatprep.subr.mxu0 %v280
    %346 = vmatpush1.msra.mxu0 %v279
    %347 = vmatprep.subr.mxu0 %v283
    %348 = vmatpush1.msra.mxu0 %v282
    %349 = vmatprep.subr.mxu0 %v286
    %350 = vmatpush1.msra.mxu0 %v285
    %351 = vmatprep.subr.mxu0 %v289
    %352 = vmatpush1.msra.mxu0 %v288
    %353 = vmatprep.subr.mxu0 0.0
    %354 = vmatpush1.msra.mxu0 0.0
    %355 = vmatprep.subr.mxu0 0.0
    %356 = vmatpush1.msra.mxu0 0.0
    %357 = vmatprep.subr.mxu0 0.0
    %358 = vmatpush1.msra.mxu0 0.0
    %359 = vmatprep.subr.mxu0 0.0
    %360 = vmatpush1.msra.mxu0 0.0
    %361 = vmatprep.subr.mxu0 0.0
    %362 = vmatpush1.msra.mxu0 0.0
    %363 = vmatprep.subr.mxu0 0.0
    %364 = vmatpush1.msra.mxu0 0.0
    %365 = vmatprep.subr.mxu0 0.0
    %366 = vmatpush1.msra.mxu0 0.0
    %367 = vmatprep.subr.mxu0 0.0
    %368 = vmatpush1.msra.mxu0 0.0
    %369 = vmatprep.subr.mxu0 0.0
    %370 = vmatpush1.msra.mxu0 0.0
    %371 = vmatprep.subr.mxu0 0.0
    %372 = vmatpush1.msra.mxu0 0.0
    %373 = vmatprep.subr.mxu0 0.0
    %374 = vmatpush1.msra.mxu0 0.0
    %375 = vmatprep.subr.mxu0 0.0
    %376 = vmatpush1.msra.mxu0 0.0
    %377 = vmatprep.subr.mxu0 0.0
    %378 = vmatpush1.msra.mxu0 0.0
    %379 = vmatprep.subr.mxu0 0.0
    %380 = vmatpush1.msra.mxu0 0.0
    %381 = vmatprep.subr.mxu0 0.0
    %382 = vmatpush1.msra.mxu0 0.0
    %383 = vmatprep.subr.mxu0 0.0
    %384 = vmatpush1.msra.mxu0 0.0
    %385 = vmatprep.subr.mxu0 0.0
    %386 = vmatpush1.msra.mxu0 0.0
    %387 = vmatprep.subr.mxu0 0.0
    %388 = vmatpush1.msra.mxu0 0.0
    %389 = vmatprep.subr.mxu0 0.0
    %390 = vmatpush1.msra.mxu0 0.0
    %391 = vmatprep.subr.mxu0 0.0
    %392 = vmatpush1.msra.mxu0 0.0
    %393 = vmatprep.subr.mxu0 0.0
    %394 = vmatpush1.msra.mxu0 0.0
    %395 = vmatprep.subr.mxu0 0.0
    %396 = vmatpush1.msra.mxu0 0.0
    %397 = vmatprep.mubr.f32.mxu0 0.0
    %398 = vmatmul.mubr.f32.gmra.mrb[0].mxu0 %v310
    %v399 = vpop.f32.mrb[0].mxu0
    %v400 = vadd.f32 %v296, %v399
    %v401 = vpop.f32.mrb[0].mxu0
    %v402 = vadd.f32 %v300, %v401
    %403 = vmatprep.mubr.f32.mxu0 0.0
    %404 = vmatmul.mubr.f32.gmra.mrb[0].mxu0 %v313
    %v405 = vpop.f32.mrb[0].mxu0
    %v406 = vadd.f32 %v296, %v405
    %v407 = vpop.f32.mrb[0].mxu0
    %v408 = vadd.f32 %v300, %v407
    %409 = vmatprep.mubr.f32.mxu0 0.0
    %410 = vmatmul.mubr.f32.gmra.mrb[0].mxu0 %v316
    %v411 = vpop.f32.mrb[0].mxu0
    %v412 = vadd.f32 %v296, %v411
    %v413 = vpop.f32.mrb[0].mxu0
    %v414 = vadd.f32 %v300, %v413
    %415 = vmatprep.mubr.f32.mxu0 0.0
    %416 = vmatmul.mubr.f32.gmra.mrb[0].mxu0 %v319
    %v417 = vpop.f32.mrb[0].mxu0
    %v418 = vadd.f32 %v296, %v417
    %v419 = vpop.f32.mrb[0].mxu0
    %v420 = vadd.f32 %v300, %v419
    %421 = vmatprep.mubr.f32.mxu0 0.0
    %422 = vmatmul.mubr.f32.gmra.mrb[0].mxu0 %v322
    %v423 = vpop.f32.mrb[0].mxu0
    %v424 = vadd.f32 %v296, %v423
    %v425 = vpop.f32.mrb[0].mxu0
    %v426 = vadd.f32 %v300, %v425
    %427 = vmatprep.mubr.f32.mxu0 0.0
    %428 = vmatmul.mubr.f32.gmra.mrb[0].mxu0 %v325
    %v429 = vpop.f32.mrb[0].mxu0
    %v430 = vadd.f32 %v296, %v429
    %v431 = vpop.f32.mrb[0].mxu0
    %v432 = vadd.f32 %v300, %v431
    %433 = vmatprep.mubr.f32.mxu0 0.0
    %434 = vmatmul.mubr.f32.gmra.mrb[0].mxu0 %v328
    %v435 = vpop.f32.mrb[0].mxu0
    %v436 = vadd.f32 %v296, %v435
    %v437 = vpop.f32.mrb[0].mxu0
    %v438 = vadd.f32 %v300, %v437
    %439 = vmatprep.mubr.f32.mxu0 0.0
    %440 = vmatmul.mubr.f32.gmra.mrb[0].mxu0 %v331
    %v441 = vpop.f32.mrb[0].mxu0
    %v442 = vadd.f32 %v296, %v441
    %v443 = vpop.f32.mrb[0].mxu0
    %v444 = vadd.f32 %v300, %v443
    %445 = vdwg.mxu0
    %446 = vmatprep.subr.mxu0 0.0
    %447 = vmatpush1.msra.mxu0 %v263
    %448 = vmatprep.subr.mxu0 0.0
    %449 = vmatpush1.msra.mxu0 %v266
    %450 = vmatprep.subr.mxu0 0.0
    %451 = vmatpush1.msra.mxu0 %v269
    %452 = vmatprep.subr.mxu0 0.0
    %453 = vmatpush1.msra.mxu0 %v272
    %454 = vmatprep.subr.mxu0 0.0
    %455 = vmatpush1.msra.mxu0 %v275
    %456 = vmatprep.subr.mxu0 0.0
    %457 = vmatpush1.msra.mxu0 %v278
    %458 = vmatprep.subr.mxu0 0.0
    %459 = vmatpush1.msra.mxu0 %v281
    %460 = vmatprep.subr.mxu0 0.0
    %461 = vmatpush1.msra.mxu0 %v284
    %462 = vmatprep.subr.mxu0 0.0
    %463 = vmatpush1.msra.mxu0 %v287
    %464 = vmatprep.subr.mxu0 0.0
    %465 = vmatpush1.msra.mxu0 %v290
    %466 = vmatprep.subr.mxu0 0.0
    %467 = vmatpush1.msra.mxu0 0.0
    %468 = vmatprep.subr.mxu0 0.0
    %469 = vmatpush1.msra.mxu0 0.0
    %470 = vmatprep.subr.mxu0 0.0
    %471 = vmatpush1.msra.mxu0 0.0
    %472 = vmatprep.subr.mxu0 0.0
    %473 = vmatpush1.msra.mxu0 0.0
    %474 = vmatprep.subr.mxu0 0.0
    %475 = vmatpush1.msra.mxu0 0.0
    %476 = vmatprep.subr.mxu0 0.0
    %477 = vmatpush1.msra.mxu0 0.0
    %478 = vmatprep.subr.mxu0 0.0
    %479 = vmatpush1.msra.mxu0 0.0
    %480 = vmatprep.subr.mxu0 0.0
    %481 = vmatpush1.msra.mxu0 0.0
    %482 = vmatprep.subr.mxu0 0.0
    %483 = vmatpush1.msra.mxu0 0.0
    %484 = vmatprep.subr.mxu0 0.0
    %485 = vmatpush1.msra.mxu0 0.0
    %486 = vmatprep.subr.mxu0 0.0
    %487 = vmatpush1.msra.mxu0 0.0
    %488 = vmatprep.subr.mxu0 0.0
    %489 = vmatpush1.msra.mxu0 0.0
    %490 = vmatprep.subr.mxu0 0.0
    %491 = vmatpush1.msra.mxu0 0.0
    %492 = vmatprep.subr.mxu0 0.0
    %493 = vmatpush1.msra.mxu0 0.0
    %494 = vmatprep.subr.mxu0 0.0
    %495 = vmatpush1.msra.mxu0 0.0
    %496 = vmatprep.subr.mxu0 0.0
    %497 = vmatpush1.msra.mxu0 0.0
    %498 = vmatprep.subr.mxu0 0.0
    %499 = vmatpush1.msra.mxu0 0.0
    %500 = vmatprep.subr.mxu0 0.0
    %501 = vmatpush1.msra.mxu0 0.0
    %502 = vmatprep.subr.mxu0 0.0
    %503 = vmatpush1.msra.mxu0 0.0
    %504 = vmatprep.subr.mxu0 0.0
    %505 = vmatpush1.msra.mxu0 0.0
    %506 = vmatprep.subr.mxu0 0.0
    %507 = vmatpush1.msra.mxu0 0.0
    %508 = vmatprep.subr.mxu0 0.0
    %509 = vmatpush1.msra.mxu0 0.0
    %510 = vmatprep.mubr.f32.mxu0 0.0
    %511 = vmatmul.mubr.f32.gmra.mrb[0].mxu0 %v310
    %v512 = vpop.f32.mrb[0].mxu0
    %v513 = vadd.f32 %v304, %v512
    %v514 = vpop.f32.mrb[0].mxu0
    %515 = vmatprep.mubr.f32.mxu0 0.0
    %516 = vmatmul.mubr.f32.gmra.mrb[0].mxu0 %v313
    %v517 = vpop.f32.mrb[0].mxu0
    %v518 = vadd.f32 %v304, %v517
    %v519 = vpop.f32.mrb[0].mxu0
    %520 = vmatprep.mubr.f32.mxu0 0.0
    %521 = vmatmul.mubr.f32.gmra.mrb[0].mxu0 %v316
    %v522 = vpop.f32.mrb[0].mxu0
    %v523 = vadd.f32 %v304, %v522
    %v524 = vpop.f32.mrb[0].mxu0
    %525 = vmatprep.mubr.f32.mxu0 0.0
    %526 = vmatmul.mubr.f32.gmra.mrb[0].mxu0 %v319
    %v527 = vpop.f32.mrb[0].mxu0
    %v528 = vadd.f32 %v304, %v527
    %v529 = vpop.f32.mrb[0].mxu0
    %530 = vmatprep.mubr.f32.mxu0 0.0
    %531 = vmatmul.mubr.f32.gmra.mrb[0].mxu0 %v322
    %v532 = vpop.f32.mrb[0].mxu0
    %v533 = vadd.f32 %v304, %v532
    %v534 = vpop.f32.mrb[0].mxu0
    %535 = vmatprep.mubr.f32.mxu0 0.0
    %536 = vmatmul.mubr.f32.gmra.mrb[0].mxu0 %v325
    %v537 = vpop.f32.mrb[0].mxu0
    %v538 = vadd.f32 %v304, %v537
    %v539 = vpop.f32.mrb[0].mxu0
    %540 = vmatprep.mubr.f32.mxu0 0.0
    %541 = vmatmul.mubr.f32.gmra.mrb[0].mxu0 %v328
    %v542 = vpop.f32.mrb[0].mxu0
    %v543 = vadd.f32 %v304, %v542
    %v544 = vpop.f32.mrb[0].mxu0
    %545 = vmatprep.mubr.f32.mxu0 0.0
    %546 = vmatmul.mubr.f32.gmra.mrb[0].mxu0 %v331
    %v547 = vpop.f32.mrb[0].mxu0
    %v548 = vadd.f32 %v304, %v547
    %v549 = vpop.f32.mrb[0].mxu0
    %550 = vdwg.mxu0
    %v551 = vmax.f32 %v400, 0.0
    %v552 = vmax.f32 %v402, 0.0
    %v553 = vmax.f32 %v513, 0.0
    %v554 = vmax.f32 %v406, 0.0
    %v555 = vmax.f32 %v408, 0.0
    %v556 = vmax.f32 %v518, 0.0
    %v557 = vmax.f32 %v412, 0.0
    %v558 = vmax.f32 %v414, 0.0
    %v559 = vmax.f32 %v523, 0.0
    %v560 = vmax.f32 %v418, 0.0
    %v561 = vmax.f32 %v420, 0.0
    %v562 = vmax.f32 %v528, 0.0
    %v563 = vmax.f32 %v424, 0.0
    %v564 = vmax.f32 %v426, 0.0
    %v565 = vmax.f32 %v533, 0.0
    %v566 = vmax.f32 %v430, 0.0
    %v567 = vmax.f32 %v432, 0.0
    %v568 = vmax.f32 %v538, 0.0
    %v569 = vmax.f32 %v436, 0.0
    %v570 = vmax.f32 %v438, 0.0
    %v571 = vmax.f32 %v543, 0.0
    %v572 = vmax.f32 %v442, 0.0
    %v573 = vmax.f32 %v444, 0.0
    %v574 = vmax.f32 %v548, 0.0
    %v575 = vld [vmem:[#allocation6] sm:$0xff]
    %v576 = vld [vmem:[#allocation6 + $0x8] sm:$0xff]
    %v577 = vld [vmem:[#allocation6 + $0x10] sm:$0xff]
    %v578 = vld [vmem:[#allocation6 + $0x18] sm:$0xff]
    %v579 = vld [vmem:[#allocation6 + $0x20] sm:$0xff]
    %v580 = vld [vmem:[#allocation6 + $0x28] sm:$0xff]
    %v581 = vmul.f32 %v551, %v575
    %v582 = vmul.f32 %v552, %v576
    %v583 = vmul.f32 %v553, %v577
    %v584 = vmul.f32 %v554, %v578
    %v585 = vmul.f32 %v555, %v579
    %v586 = vmul.f32 %v556, %v580
    %v587 = vmul.f32 %v557, %v575
    %v588 = vmul.f32 %v558, %v576
    %v589 = vmul.f32 %v559, %v577
    %v590 = vmul.f32 %v560, %v578
    %v591 = vmul.f32 %v561, %v579
    %v592 = vmul.f32 %v562, %v580
    %v593 = vmul.f32 %v563, %v575
    %v594 = vmul.f32 %v564, %v576
    %v595 = vmul.f32 %v565, %v577
    %v596 = vmul.f32 %v566, %v578
    %v597 = vmul.f32 %v567, %v579
    %v598 = vmul.f32 %v568, %v580
    %v599 = vmul.f32 %v569, %v575
    %v600 = vmul.f32 %v570, %v576
    %v601 = vmul.f32 %v571, %v577
    %v602 = vmul.f32 %v572, %v578
    %v603 = vmul.f32 %v573, %v579
    %v604 = vmul.f32 %v574, %v580
    %v605 = vlaneseq
    %v606 = vand.u32 %v605, 127
    %v607 = vmul.u32 %v92, 16
    %v608 = vsub.s32 %v606, %v607
    %vm609 = vcmp.ge.s32.totalorder %v608, 0
    %vm610 = vcmp.lt.s32.totalorder %v608, 16
    %vm611 = vmand %vm609, %vm610
    %v612 = vsel %vm611, 1, 0
    %v613 = vcvt.s32.f32 %v612
    %vm614 = vcmask 523264
    %v616 = vsel %vm614, %v613, 0
    %618 = vmatprep.subr.mxu0 %v582
    %619 = vmatpush1.msra.mxu0 %v581
    %620 = vmatprep.subr.mxu0 %v585
    %621 = vmatpush1.msra.mxu0 %v584
    %622 = vmatprep.subr.mxu0 %v588
    %623 = vmatpush1.msra.mxu0 %v587
    %624 = vmatprep.subr.mxu0 %v591
    %625 = vmatpush1.msra.mxu0 %v590
    %626 = vmatprep.subr.mxu0 %v594
    %627 = vmatpush1.msra.mxu0 %v593
    %628 = vmatprep.subr.mxu0 %v597
    %629 = vmatpush1.msra.mxu0 %v596
    %630 = vmatprep.subr.mxu0 %v600
    %631 = vmatpush1.msra.mxu0 %v599
    %632 = vmatprep.subr.mxu0 %v603
    %633 = vmatpush1.msra.mxu0 %v602
    %634 = vmatprep.subr.mxu0 0.0
    %635 = vmatpush1.msra.mxu0 0.0
    %636 = vmatprep.subr.mxu0 0.0
    %637 = vmatpush1.msra.mxu0 0.0
    %638 = vmatprep.subr.mxu0 0.0
    %639 = vmatpush1.msra.mxu0 0.0
    %640 = vmatprep.subr.mxu0 0.0
    %641 = vmatpush1.msra.mxu0 0.0
    %642 = vmatprep.subr.mxu0 0.0
    %643 = vmatpush1.msra.mxu0 0.0
    %644 = vmatprep.subr.mxu0 0.0
    %645 = vmatpush1.msra.mxu0 0.0
    %646 = vmatprep.subr.mxu0 0.0
    %647 = vmatpush1.msra.mxu0 0.0
    %648 = vmatprep.subr.mxu0 0.0
    %649 = vmatpush1.msra.mxu0 0.0
    %650 = vmatprep.subr.mxu0 0.0
    %651 = vmatpush1.msra.mxu0 0.0
    %652 = vmatprep.subr.mxu0 0.0
    %653 = vmatpush1.msra.mxu0 0.0
    %654 = vmatprep.subr.mxu0 0.0
    %655 = vmatpush1.msra.mxu0 0.0
    %656 = vmatprep.subr.mxu0 0.0
    %657 = vmatpush1.msra.mxu0 0.0
    %658 = vmatprep.subr.mxu0 0.0
    %659 = vmatpush1.msra.mxu0 0.0
    %660 = vmatprep.subr.mxu0 0.0
    %661 = vmatpush1.msra.mxu0 0.0
    %662 = vmatprep.subr.mxu0 0.0
    %663 = vmatpush1.msra.mxu0 0.0
    %664 = vmatprep.subr.mxu0 0.0
    %665 = vmatpush1.msra.mxu0 0.0
    %666 = vmatprep.subr.mxu0 0.0
    %667 = vmatpush1.msra.mxu0 0.0
    %668 = vmatprep.subr.mxu0 0.0
    %669 = vmatpush1.msra.mxu0 0.0
    %670 = vmatprep.subr.mxu0 0.0
    %671 = vmatpush1.msra.mxu0 0.0
    %672 = vmatprep.subr.mxu0 0.0
    %673 = vmatpush1.msra.mxu0 0.0
    %674 = vmatprep.subr.mxu0 0.0
    %675 = vmatpush1.msra.mxu0 0.0
    %676 = vmatprep.subr.mxu0 0.0
    %677 = vmatpush1.msra.mxu0 0.0
    %678 = vmatprep.subr.mxu0 0.0
    %679 = vmatpush1.msra.mxu0 0.0
    %680 = vmatprep.subr.mxu0 0.0
    %681 = vmatpush1.msra.mxu0 0.0
    %682 = vmatprep.mubr.f32.mxu0 0.0
    %683 = vmatmul.mubr.f32.gmra.mrb[0].mxu0 %v616
    %v684 = vpop.f32.mrb[0].mxu0
    %v685 = vadd.f32 0.0, %v684
    %v686 = vpop.f32.mrb[0].mxu0
    %v687 = vadd.f32 0.0, %v686
    %688 = vdwg.mxu0
    %689 = vmatprep.subr.mxu0 0.0
    %690 = vmatpush1.msra.mxu0 %v583
    %691 = vmatprep.subr.mxu0 0.0
    %692 = vmatpush1.msra.mxu0 %v586
    %693 = vmatprep.subr.mxu0 0.0
    %694 = vmatpush1.msra.mxu0 %v589
    %695 = vmatprep.subr.mxu0 0.0
    %696 = vmatpush1.msra.mxu0 %v592
    %697 = vmatprep.subr.mxu0 0.0
    %698 = vmatpush1.msra.mxu0 %v595
    %699 = vmatprep.subr.mxu0 0.0
    %700 = vmatpush1.msra.mxu0 %v598
    %701 = vmatprep.subr.mxu0 0.0
    %702 = vmatpush1.msra.mxu0 %v601
    %703 = vmatprep.subr.mxu0 0.0
    %704 = vmatpush1.msra.mxu0 %v604
    %705 = vmatprep.subr.mxu0 0.0
    %706 = vmatpush1.msra.mxu0 0.0
    %707 = vmatprep.subr.mxu0 0.0
    %708 = vmatpush1.msra.mxu0 0.0
    %709 = vmatprep.subr.mxu0 0.0
    %710 = vmatpush1.msra.mxu0 0.0
    %711 = vmatprep.subr.mxu0 0.0
    %712 = vmatpush1.msra.mxu0 0.0
    %713 = vmatprep.subr.mxu0 0.0
    %714 = vmatpush1.msra.mxu0 0.0
    %715 = vmatprep.subr.mxu0 0.0
    %716 = vmatpush1.msra.mxu0 0.0
    %717 = vmatprep.subr.mxu0 0.0
    %718 = vmatpush1.msra.mxu0 0.0
    %719 = vmatprep.subr.mxu0 0.0
    %720 = vmatpush1.msra.mxu0 0.0
    %721 = vmatprep.subr.mxu0 0.0
    %722 = vmatpush1.msra.mxu0 0.0
    %723 = vmatprep.subr.mxu0 0.0
    %724 = vmatpush1.msra.mxu0 0.0
    %725 = vmatprep.subr.mxu0 0.0
    %726 = vmatpush1.msra.mxu0 0.0
    %727 = vmatprep.subr.mxu0 0.0
    %728 = vmatpush1.msra.mxu0 0.0
    %729 = vmatprep.subr.mxu0 0.0
    %730 = vmatpush1.msra.mxu0 0.0
    %731 = vmatprep.subr.mxu0 0.0
    %732 = vmatpush1.msra.mxu0 0.0
    %733 = vmatprep.subr.mxu0 0.0
    %734 = vmatpush1.msra.mxu0 0.0
    %735 = vmatprep.subr.mxu0 0.0
    %736 = vmatpush1.msra.mxu0 0.0
    %737 = vmatprep.subr.mxu0 0.0
    %738 = vmatpush1.msra.mxu0 0.0
    %739 = vmatprep.subr.mxu0 0.0
    %740 = vmatpush1.msra.mxu0 0.0
    %741 = vmatprep.subr.mxu0 0.0
    %742 = vmatpush1.msra.mxu0 0.0
    %743 = vmatprep.subr.mxu0 0.0
    %744 = vmatpush1.msra.mxu0 0.0
    %745 = vmatprep.subr.mxu0 0.0
    %746 = vmatpush1.msra.mxu0 0.0
    %747 = vmatprep.subr.mxu0 0.0
    %748 = vmatpush1.msra.mxu0 0.0
    %749 = vmatprep.subr.mxu0 0.0
    %750 = vmatpush1.msra.mxu0 0.0
    %751 = vmatprep.subr.mxu0 0.0
    %752 = vmatpush1.msra.mxu0 0.0
    %753 = vmatprep.mubr.f32.mxu0 0.0
    %754 = vmatmul.mubr.f32.gmra.mrb[0].mxu0 %v616
    %v755 = vpop.f32.mrb[0].mxu0
    %v756 = vadd.f32 0.0, %v755
    %v757 = vpop.f32.mrb[0].mxu0
    %758 = vdwg.mxu0
    %s759 = sld [smem:[#allocation2]]
    %v760 = vadd.f32 %v685, 0.0
    %v761 = vadd.f32 %v760, %v687
    %v762 = vadd.f32 %v761, %v756
    %v763 = vstv %s759
    %v764 = vadd.f32 %v763, %v762
    %v765 = vmax.f32 %v764, 0.0
    %v766 = vld [vmem:[%s5] sm:$0xff]
    %v767 = vld [vmem:[%s5 + $0x8] sm:$0xff]
    %v768 = vld [vmem:[%s5 + $0x10] sm:$0xff]
    %v769 = vld [vmem:[%s5 + $0x18] sm:$0xff]
    %v770 = vld [vmem:[%s5 + $0x20] sm:$0xff]
    %v771 = vld [vmem:[%s5 + $0x28] sm:$0xff]
    %v772 = vld [vmem:[%s5 + $0x30] sm:$0xff]
    %v773 = vld [vmem:[%s5 + $0x38] sm:$0xff]
    %v774 = vld [vmem:[%s5 + $0x40] sm:$0xff]
    %v775 = vld [vmem:[%s5 + $0x48] sm:$0xff]
    %v776 = vld [vmem:[%s5 + $0x50] sm:$0xff]
    %v777 = vld [vmem:[%s5 + $0x58] sm:$0xff]
    %v778 = vld [vmem:[%s5 + $0x60] sm:$0xff]
    %v779 = vld [vmem:[%s5 + $0x68] sm:$0xff]
    %v780 = vld [vmem:[%s5 + $0x70] sm:$0xff]
    %v781 = vld [vmem:[%s5 + $0x78] sm:$0xff]
    %v782 = vld [vmem:[%s6] sm:$0x1]
    %v784 = vlaneseq
    %v785 = vshrl.u32 %v784, 7
    %v786 = vsub.s32 0, %v785
    %v787 = vrot.slane %v782, %v786
    %789 = vmatprep.subr.mxu0 0.0
    %790 = vmatpush1.msra.mxu0 %v766
    %791 = vmatprep.subr.mxu0 0.0
    %792 = vmatpush1.msra.mxu0 %v767
    %793 = vmatprep.subr.mxu0 0.0
    %794 = vmatpush1.msra.mxu0 %v768
    %795 = vmatprep.subr.mxu0 0.0
    %796 = vmatpush1.msra.mxu0 %v769
    %797 = vmatprep.subr.mxu0 0.0
    %798 = vmatpush1.msra.mxu0 %v770
    %799 = vmatprep.subr.mxu0 0.0
    %800 = vmatpush1.msra.mxu0 %v771
    %801 = vmatprep.subr.mxu0 0.0
    %802 = vmatpush1.msra.mxu0 %v772
    %803 = vmatprep.subr.mxu0 0.0
    %804 = vmatpush1.msra.mxu0 %v773
    %805 = vmatprep.subr.mxu0 0.0
    %806 = vmatpush1.msra.mxu0 %v774
    %807 = vmatprep.subr.mxu0 0.0
    %808 = vmatpush1.msra.mxu0 %v775
    %809 = vmatprep.subr.mxu0 0.0
    %810 = vmatpush1.msra.mxu0 %v776
    %811 = vmatprep.subr.mxu0 0.0
    %812 = vmatpush1.msra.mxu0 %v777
    %813 = vmatprep.subr.mxu0 0.0
    %814 = vmatpush1.msra.mxu0 %v778
    %815 = vmatprep.subr.mxu0 0.0
    %816 = vmatpush1.msra.mxu0 %v779
    %817 = vmatprep.subr.mxu0 0.0
    %818 = vmatpush1.msra.mxu0 %v780
    %819 = vmatprep.subr.mxu0 0.0
    %820 = vmatpush1.msra.mxu0 %v781
    %821 = vmatprep.subr.mxu0 0.0
    %822 = vmatpush1.msra.mxu0 0.0
    %823 = vmatprep.subr.mxu0 0.0
    %824 = vmatpush1.msra.mxu0 0.0
    %825 = vmatprep.subr.mxu0 0.0
    %826 = vmatpush1.msra.mxu0 0.0
    %827 = vmatprep.subr.mxu0 0.0
    %828 = vmatpush1.msra.mxu0 0.0
    %829 = vmatprep.subr.mxu0 0.0
    %830 = vmatpush1.msra.mxu0 0.0
    %831 = vmatprep.subr.mxu0 0.0
    %832 = vmatpush1.msra.mxu0 0.0
    %833 = vmatprep.subr.mxu0 0.0
    %834 = vmatpush1.msra.mxu0 0.0
    %835 = vmatprep.subr.mxu0 0.0
    %836 = vmatpush1.msra.mxu0 0.0
    %837 = vmatprep.subr.mxu0 0.0
    %838 = vmatpush1.msra.mxu0 0.0
    %839 = vmatprep.subr.mxu0 0.0
    %840 = vmatpush1.msra.mxu0 0.0
    %841 = vmatprep.subr.mxu0 0.0
    %842 = vmatpush1.msra.mxu0 0.0
    %843 = vmatprep.subr.mxu0 0.0
    %844 = vmatpush1.msra.mxu0 0.0
    %845 = vmatprep.subr.mxu0 0.0
    %846 = vmatpush1.msra.mxu0 0.0
    %847 = vmatprep.subr.mxu0 0.0
    %848 = vmatpush1.msra.mxu0 0.0
    %849 = vmatprep.subr.mxu0 0.0
    %850 = vmatpush1.msra.mxu0 0.0
    %851 = vmatprep.subr.mxu0 0.0
    %852 = vmatpush1.msra.mxu0 0.0
    %853 = vmatprep.mubr.f32.mxu0 0.0
    %854 = vmatmul.mubr.f32.gmra.mrb[0].mxu0 %v765
    %v855 = vpop.f32.mrb[0].mxu0
    %v856 = vadd.f32 %v787, %v855
    %v857 = vpop.f32.mrb[0].mxu0
    %858 = vdwg.mxu0
    %v859 = vmax.f32 %v856, 0.0
    %v860 = vld [vmem:[#allocation8] sm:$0xff]
    %v861 = vld [vmem:[#allocation8 + $0x8] sm:$0xff]
    %v862 = vld [vmem:[#allocation8 + $0x10] sm:$0xff]
    %v863 = vld [vmem:[#allocation8 + $0x18] sm:$0xff]
    %v864 = vld [vmem:[#allocation8 + $0x20] sm:$0xff]
    %v865 = vld [vmem:[#allocation8 + $0x28] sm:$0xff]
    %v866 = vld [vmem:[#allocation8 + $0x30] sm:$0xff]
    %v867 = vld [vmem:[#allocation8 + $0x38] sm:$0xf]
    %v868 = vld [vmem:[%s8] sm:$0x1]
    %v870 = vlaneseq
    %v871 = vshrl.u32 %v870, 7
    %v872 = vsub.s32 0, %v871
    %v873 = vrot.slane %v868, %v872
    %v876 = vsel %vm252, %v859, 0
    %vm878 = vcmask 1043456
    %v880 = vsel %vm878, %v867, 0
    %882 = vmatprep.subr.mxu0 0.0
    %883 = vmatpush1.msra.mxu0 %v860
    %884 = vmatprep.subr.mxu0 0.0
    %885 = vmatpush1.msra.mxu0 %v861
    %886 = vmatprep.subr.mxu0 0.0
    %887 = vmatpush1.msra.mxu0 %v862
    %888 = vmatprep.subr.mxu0 0.0
    %889 = vmatpush1.msra.mxu0 %v863
    %890 = vmatprep.subr.mxu0 0.0
    %891 = vmatpush1.msra.mxu0 %v864
    %892 = vmatprep.subr.mxu0 0.0
    %893 = vmatpush1.msra.mxu0 %v865
    %894 = vmatprep.subr.mxu0 0.0
    %895 = vmatpush1.msra.mxu0 %v866
    %896 = vmatprep.subr.mxu0 0.0
    %897 = vmatpush1.msra.mxu0 %v880
    %898 = vmatprep.subr.mxu0 0.0
    %899 = vmatpush1.msra.mxu0 0.0
    %900 = vmatprep.subr.mxu0 0.0
    %901 = vmatpush1.msra.mxu0 0.0
    %902 = vmatprep.subr.mxu0 0.0
    %903 = vmatpush1.msra.mxu0 0.0
    %904 = vmatprep.subr.mxu0 0.0
    %905 = vmatpush1.msra.mxu0 0.0
    %906 = vmatprep.subr.mxu0 0.0
    %907 = vmatpush1.msra.mxu0 0.0
    %908 = vmatprep.subr.mxu0 0.0
    %909 = vmatpush1.msra.mxu0 0.0
    %910 = vmatprep.subr.mxu0 0.0
    %911 = vmatpush1.msra.mxu0 0.0
    %912 = vmatprep.subr.mxu0 0.0
    %913 = vmatpush1.msra.mxu0 0.0
    %914 = vmatprep.subr.mxu0 0.0
    %915 = vmatpush1.msra.mxu0 0.0
    %916 = vmatprep.subr.mxu0 0.0
    %917 = vmatpush1.msra.mxu0 0.0
    %918 = vmatprep.subr.mxu0 0.0
    %919 = vmatpush1.msra.mxu0 0.0
    %920 = vmatprep.subr.mxu0 0.0
    %921 = vmatpush1.msra.mxu0 0.0
    %922 = vmatprep.subr.mxu0 0.0
    %923 = vmatpush1.msra.mxu0 0.0
    %924 = vmatprep.subr.mxu0 0.0
    %925 = vmatpush1.msra.mxu0 0.0
    %926 = vmatprep.subr.mxu0 0.0
    %927 = vmatpush1.msra.mxu0 0.0
    %928 = vmatprep.subr.mxu0 0.0
    %929 = vmatpush1.msra.mxu0 0.0
    %930 = vmatprep.subr.mxu0 0.0
    %931 = vmatpush1.msra.mxu0 0.0
    %932 = vmatprep.subr.mxu0 0.0
    %933 = vmatpush1.msra.mxu0 0.0
    %934 = vmatprep.subr.mxu0 0.0
    %935 = vmatpush1.msra.mxu0 0.0
    %936 = vmatprep.subr.mxu0 0.0
    %937 = vmatpush1.msra.mxu0 0.0
    %938 = vmatprep.subr.mxu0 0.0
    %939 = vmatpush1.msra.mxu0 0.0
    %940 = vmatprep.subr.mxu0 0.0
    %941 = vmatpush1.msra.mxu0 0.0
    %942 = vmatprep.subr.mxu0 0.0
    %943 = vmatpush1.msra.mxu0 0.0
    %944 = vmatprep.subr.mxu0 0.0
    %945 = vmatpush1.msra.mxu0 0.0
    %946 = vmatprep.mubr.f32.mxu0 0.0
    %947 = vmatmul.mubr.f32.gmra.mrb[0].mxu0 %v876
    %v948 = vpop.f32.mrb[0].mxu0
    %v949 = vadd.f32 %v873, %v948
    %v950 = vpop.f32.mrb[0].mxu0
    %951 = vdwg.mxu0
    %952 = vst [vmem:[#allocation9] sm:$0xf] %v949
    // Predicated region
    $region50: #{tpu_custom_call.1} parent=1 // pred_check
      _
    $region51: #{tpu_custom_call.1} parent=1 // pred_check_branch
      %954 = sbr.rel (0) target = $region53
    $region52: #{tpu_custom_call.1} parent=1 // pred_region
      %s956 = ssub.s32 64, 64
      %957 = vsyncadd [#allocation5], %s956
      %s959 = sshll.u32 [#allocation9], 4
      %s960 = int_to_ptr.vmem [resolvable:$true] %s959
      %962 = dma.vmem_to_hbm [thread:$0]  %s960, 64, %s9, [#allocation5]
    $region53: #{tpu_custom_call.1} parent=1 // pred_fallthru
      _
    // Predicated region
    $region54: #{tpu_custom_call.1} parent=1 // pred_check
      _
    $region55: #{tpu_custom_call.1} parent=1 // pred_check_branch
      %964 = sbr.rel (0) target = $region57
    $region56: #{tpu_custom_call.1} parent=1 // pred_region
      %965 = dma.done [#allocation5], 64
    $region57: #{tpu_custom_call.1} parent=1 // pred_fallthru
      _
    %966 = vsyncpa [#allocation4], 1
    %967 = vsyncpa [#allocation7], 1
    %968 = vsyncpa [#allocation5], 1

</llo_original>
